<compile_context>
chip_gen: v6e
topology: v6e:2x2x1
jax: 0.10.0
libtpu: 0.0.40
codegen_flags: <defaults>
</compile_context>

<pallas_src>
import math

import jax
import jax.numpy as jnp
from jax.experimental import pallas as pl
from jax.experimental.pallas import tpu as pltpu

_SQRT2 = math.sqrt(2.0)
_HALF_LOG_2PI = 0.5 * math.log(2.0 * math.pi)   # == -log(amp), amp = 1/sqrt(2*pi)

_SINGLE_BLOCK_MAX_ELEMS = 128 * 1024   # <= 512 KiB f32 per operand -> one full-array block
_BLOCK_TARGET_ELEMS = 64 * 1024        # tiled path: ~256 KiB f32 per operand block


def _round_up(x, m):
    return ((x + m - 1) // m) * m


def _make_rle_kernel(batch, size_average):
    """Kernel over one (tb, K*D) row tile of all six lane-dense operands."""

    def kernel(nf_ref, pred_ref, sigma_ref, gt_ref, w_ref, wx_ref, out_ref, acc_ref):
        step = pl.program_id(0)

        @pl.when(step == 0)
        def _init():
            acc_ref[0] = jnp.float32(0.0)   # running loss sum
            acc_ref[1] = jnp.float32(0.0)   # running weight sum

        # Cast to f32 inside the kernel (inputs may arrive as bf16); accumulate in f32.
        nf = nf_ref[...].astype(jnp.float32)
        pred = pred_ref[...].astype(jnp.float32)
        sigma = sigma_ref[...].astype(jnp.float32)
        gt = gt_ref[...].astype(jnp.float32)
        w = w_ref[...].astype(jnp.float32)
        wx = wx_ref[...].astype(jnp.float32)

        # logQ = log(sigma) + 0.5*log(2*pi) + |gt - pred| * (1 / (sqrt(2)*sigma + 1e-9))
        inv = pl.reciprocal(_SQRT2 * sigma + 1e-9, approx=True)
        log_q = jnp.log(sigma) + _HALF_LOG_2PI + jnp.abs(gt - pred) * inv

        loss = nf * wx + log_q * w

        acc_ref[0] = acc_ref[0] + jnp.sum(loss)
        acc_ref[1] = acc_ref[1] + jnp.sum(w)

        @pl.when(step == pl.num_programs(0) - 1)
        def _finalize():
            total = acc_ref[0]
            if size_average:
                # PyTorch gate: average over batch only if any target weight > 0.
                out_ref[0, 0] = jnp.where(acc_ref[1] > 0.0, total / batch, total)
            else:
                out_ref[0, 0] = total

    return kernel


def _reference(nf_loss, pred_jts, sigma, t, t_w, size_average=True):
    """Pure-JAX reference mirroring the PyTorch module (also the small-input XLA path)."""
    gt_uv = jnp.reshape(t, pred_jts.shape)
    w = jnp.reshape(t_w, pred_jts.shape)
    amp = 1.0 / math.sqrt(2.0 * math.pi)
    nf = nf_loss * w[:, :, :1]
    log_q = jnp.log(sigma / amp) + jnp.abs(gt_uv - pred_jts) / (_SQRT2 * sigma + 1e-9)
    loss = nf + log_q * w
    total = jnp.sum(loss)
    if size_average:
        return jnp.where(jnp.sum(w) > 0.0, total / pred_jts.shape[0], total)
    return total


def rle_loss(nf_loss, pred_jts, sigma, t, t_w, size_average=True, use_pallas=True):
    """JAX / Pallas-TPU equivalent of RLELoss.forward.

    nf_loss, pred_jts, sigma : (B, K, D) arrays (D = 2 for 2-D pose)
    t, t_w                   : any shape reshapeable to (B, K, D)
    """
    B, K, D = pred_jts.shape
    M = K * D

    if not use_pallas:
        # Tiny inputs: pallas_call launch/DMA setup overhead dominates -> let XLA fuse.
        return _reference(nf_loss, pred_jts, sigma, t, t_w, size_average)

    # Free row-major reshapes to the lane-dense (B, K*D) slab (no data movement).
    nf2 = jnp.reshape(nf_loss, (B, M))
    pred2 = jnp.reshape(pred_jts, (B, M))
    sig2 = jnp.reshape(sigma, (B, M))
    gt2 = jnp.reshape(t, (B, M))
    w3 = jnp.reshape(t_w, (B, K, D))
    w2 = jnp.reshape(w3, (B, M))
    # x-weight broadcast over the coordinate axis: layout plumbing done once in the
    # wrapper so the kernel needs no cross-lane shuffle.
    wx2 = jnp.reshape(jnp.broadcast_to(w3[:, :, :1], (B, K, D)), (B, M))

    if B * M <= _SINGLE_BLOCK_MAX_ELEMS:
        # One full-array block: full dims are always a legal block shape, no padding.
        tb = B
    else:
        tb = max(8, (_BLOCK_TARGET_ELEMS // max(M, 1)) // 8 * 8)
        b_pad = _round_up(B, tb)
        if b_pad > B:
            pad = ((0, b_pad - B), (0, 0))
            nf2 = jnp.pad(nf2, pad)
            pred2 = jnp.pad(pred2, pad)
            sig2 = jnp.pad(sig2, pad, constant_values=1.0)   # keeps log() finite
            gt2 = jnp.pad(gt2, pad)
            w2 = jnp.pad(w2, pad)                            # zero weight -> zero contribution
            wx2 = jnp.pad(wx2, pad)
    grid = (nf2.shape[0] // tb,)

    in_spec = pl.BlockSpec((tb, M), lambda i: (i, 0))
    out_spec = pl.BlockSpec((1, 1), lambda i: (0, 0),
                            memory_space=pltpu.MemorySpace.SMEM)

    n_elems = B * M
    bytes_per_elem = sum(jnp.dtype(a.dtype).itemsize
                         for a in (nf2, pred2, sig2, gt2, w2, wx2))

    out = pl.pallas_call(
        _make_rle_kernel(B, size_average),
        grid=grid,
        in_specs=[in_spec] * 6,
        out_specs=out_spec,
        out_shape=jax.ShapeDtypeStruct((1, 1), jnp.float32),
        scratch_shapes=[pltpu.SMEM((2,), jnp.float32)],
        compiler_params=pltpu.CompilerParams(
            # single reduction axis with resident SMEM accumulators
            dimension_semantics=("arbitrary",),
        ),
        cost_estimate=pl.CostEstimate(
            flops=10 * n_elems,
            transcendentals=2 * n_elems,          # log + reciprocal per element
            bytes_accessed=n_elems * bytes_per_elem + 4,
        ),
    )(nf2, pred2, sig2, gt2, w2, wx2)

    return out[0, 0]


if __name__ == "__main__":
    # Small, deterministic example shapes: batch=2, joints=8, 2-D coords.
    B, K, D = 2, 8, 2
    key = jax.random.PRNGKey(0)
    k1, k2, k3, k4, k5 = jax.random.split(key, 5)

    nf_loss = jax.random.normal(k1, (B, K, D), dtype=jnp.float32)
    pred_jts = jax.random.normal(k2, (B, K, D), dtype=jnp.float32)
    sigma = jax.random.uniform(k3, (B, K, D), dtype=jnp.float32,
                               minval=0.1, maxval=1.0)
    # targets / target weights given flattened (as in typical dataloaders)
    t = jax.random.normal(k4, (B, K * D), dtype=jnp.float32)
    t_w = (jax.random.uniform(k5, (B, K * D), dtype=jnp.float32) > 0.2).astype(jnp.float32)

    out = rle_loss(nf_loss, pred_jts, sigma, t, t_w, size_average=True)
    out = jax.block_until_ready(out)

    ref = _reference(nf_loss, pred_jts, sigma, t, t_w, size_average=True)
    # pl.reciprocal(approx=True) perturbs the 1/(sqrt(2)*sigma + eps) term at the
    # ~1e-4 relative level (summed over elements); with approx=False the kernel
    # matches the reference to <1e-5.
    assert jnp.allclose(out, ref, rtol=1e-2, atol=1e-2), (out, ref)

    print("KERNEL_OK")
</pallas_src>

<mosaic_0001>
module attributes {stable_mosaic.version = 11 : i64} {
  func.func @kernel(%arg0: i32, %arg1: memref<2x16xf32, #tpu.memory_space<vmem>>, %arg2: memref<2x16xf32, #tpu.memory_space<vmem>>, %arg3: memref<2x16xf32, #tpu.memory_space<vmem>>, %arg4: memref<2x16xf32, #tpu.memory_space<vmem>>, %arg5: memref<2x16xf32, #tpu.memory_space<vmem>>, %arg6: memref<2x16xf32, #tpu.memory_space<vmem>>, %arg7: memref<1x1xf32, #tpu.memory_space<smem>>, %arg8: memref<2xf32, #tpu.memory_space<smem>>) attributes {dimension_semantics = [#tpu.dimension_semantics<arbitrary>], iteration_bounds = array<i64: 1>, scalar_prefetch = 0 : i64, scratch_operands = 1 : i64, tpu.core_type = #tpu.core_type<tc>, window_params = [{transform_indices = @transform_0, window_bounds = array<i64: 2, 16>}, {transform_indices = @transform_1, window_bounds = array<i64: 2, 16>}, {transform_indices = @transform_2, window_bounds = array<i64: 2, 16>}, {transform_indices = @transform_3, window_bounds = array<i64: 2, 16>}, {transform_indices = @transform_4, window_bounds = array<i64: 2, 16>}, {transform_indices = @transform_5, window_bounds = array<i64: 2, 16>}, {transform_indices = @transform_6, window_bounds = array<i64: 1, 1>}]} {
    %c0_i32 = arith.constant 0 : i32
    %0 = arith.cmpi eq, %arg0, %c0_i32 : i32
    %1 = arith.extui %0 : i1 to i32
    %c0_i32_0 = arith.constant 0 : i32
    %2 = arith.cmpi ne, %1, %c0_i32_0 : i32
    scf.if %2 {
      %cst_21 = arith.constant 0.000000e+00 : f32
      %c0_22 = arith.constant 0 : index
      %41 = memref.load %arg8[%c0_22] : memref<2xf32, #tpu.memory_space<smem>>
      memref.store %cst_21, %arg8[%c0_22] : memref<2xf32, #tpu.memory_space<smem>>
      %cst_23 = arith.constant 0.000000e+00 : f32
      %c1_24 = arith.constant 1 : index
      %42 = memref.load %arg8[%c1_24] : memref<2xf32, #tpu.memory_space<smem>>
      memref.store %cst_23, %arg8[%c1_24] : memref<2xf32, #tpu.memory_space<smem>>
    } else {
    }
    %c0 = arith.constant 0 : index
    %c0_1 = arith.constant 0 : index
    %3 = vector.load %arg1[%c0, %c0_1] : memref<2x16xf32, #tpu.memory_space<vmem>>, vector<2x16xf32>
    %c0_2 = arith.constant 0 : index
    %c0_3 = arith.constant 0 : index
    %4 = vector.load %arg2[%c0_2, %c0_3] : memref<2x16xf32, #tpu.memory_space<vmem>>, vector<2x16xf32>
    %c0_4 = arith.constant 0 : index
    %c0_5 = arith.constant 0 : index
    %5 = vector.load %arg3[%c0_4, %c0_5] : memref<2x16xf32, #tpu.memory_space<vmem>>, vector<2x16xf32>
    %c0_6 = arith.constant 0 : index
    %c0_7 = arith.constant 0 : index
    %6 = vector.load %arg4[%c0_6, %c0_7] : memref<2x16xf32, #tpu.memory_space<vmem>>, vector<2x16xf32>
    %c0_8 = arith.constant 0 : index
    %c0_9 = arith.constant 0 : index
    %7 = vector.load %arg5[%c0_8, %c0_9] : memref<2x16xf32, #tpu.memory_space<vmem>>, vector<2x16xf32>
    %c0_10 = arith.constant 0 : index
    %c0_11 = arith.constant 0 : index
    %8 = vector.load %arg6[%c0_10, %c0_11] : memref<2x16xf32, #tpu.memory_space<vmem>>, vector<2x16xf32>
    %cst = arith.constant 1.41421354 : f32
    %9 = vector.broadcast %cst : f32 to vector<2x16xf32>
    %10 = arith.mulf %9, %5 : vector<2x16xf32>
    %cst_12 = arith.constant 9.99999971E-10 : f32
    %11 = vector.broadcast %cst_12 : f32 to vector<2x16xf32>
    %12 = arith.addf %10, %11 : vector<2x16xf32>
    %13 = tpu.reciprocal %12 {approx = true} : vector<2x16xf32> -> vector<2x16xf32>
    %14 = math.log %5 : vector<2x16xf32>
    %cst_13 = arith.constant 0.918938517 : f32
    %15 = vector.broadcast %cst_13 : f32 to vector<2x16xf32>
    %16 = arith.addf %14, %15 : vector<2x16xf32>
    %17 = arith.subf %6, %4 : vector<2x16xf32>
    %18 = math.absf %17 : vector<2x16xf32>
    %19 = arith.mulf %18, %13 : vector<2x16xf32>
    %20 = arith.addf %16, %19 : vector<2x16xf32>
    %21 = arith.mulf %3, %8 : vector<2x16xf32>
    %22 = arith.mulf %20, %7 : vector<2x16xf32>
    %23 = arith.addf %21, %22 : vector<2x16xf32>
    %c0_14 = arith.constant 0 : index
    %24 = memref.load %arg8[%c0_14] : memref<2xf32, #tpu.memory_space<smem>>
    %25 = vector.shape_cast %23 : vector<2x16xf32> to vector<1x2x16xf32>
    %cst_15 = arith.constant dense<0.000000e+00> : vector<1xf32>
    %26 = vector.multi_reduction <add>, %25, %cst_15 [1, 2] : vector<1x2x16xf32> to vector<1xf32>
    %27 = vector.shape_cast %26 : vector<1xf32> to vector<1x1x1xf32>
    %28 = vector.extract %27[0, 0, 0] : f32 from vector<1x1x1xf32>
    %29 = arith.addf %24, %28 : f32
    %c0_16 = arith.constant 0 : index
    %30 = memref.load %arg8[%c0_16] : memref<2xf32, #tpu.memory_space<smem>>
    memref.store %29, %arg8[%c0_16] : memref<2xf32, #tpu.memory_space<smem>>
    %c1 = arith.constant 1 : index
    %31 = memref.load %arg8[%c1] : memref<2xf32, #tpu.memory_space<smem>>
    %32 = vector.shape_cast %7 : vector<2x16xf32> to vector<1x2x16xf32>
    %cst_17 = arith.constant dense<0.000000e+00> : vector<1xf32>
    %33 = vector.multi_reduction <add>, %32, %cst_17 [1, 2] : vector<1x2x16xf32> to vector<1xf32>
    %34 = vector.shape_cast %33 : vector<1xf32> to vector<1x1x1xf32>
    %35 = vector.extract %34[0, 0, 0] : f32 from vector<1x1x1xf32>
    %36 = arith.addf %31, %35 : f32
    %c1_18 = arith.constant 1 : index
    %37 = memref.load %arg8[%c1_18] : memref<2xf32, #tpu.memory_space<smem>>
    memref.store %36, %arg8[%c1_18] : memref<2xf32, #tpu.memory_space<smem>>
    %c0_i32_19 = arith.constant 0 : i32
    %38 = arith.cmpi eq, %arg0, %c0_i32_19 : i32
    %39 = arith.extui %38 : i1 to i32
    %c0_i32_20 = arith.constant 0 : i32
    %40 = arith.cmpi ne, %39, %c0_i32_20 : i32
    scf.if %40 {
      %c0_21 = arith.constant 0 : index
      %41 = memref.load %arg8[%c0_21] : memref<2xf32, #tpu.memory_space<smem>>
      %c1_22 = arith.constant 1 : index
      %42 = memref.load %arg8[%c1_22] : memref<2xf32, #tpu.memory_space<smem>>
      %cst_23 = arith.constant 0.000000e+00 : f32
      %43 = arith.cmpf ogt, %42, %cst_23 : f32
      %cst_24 = arith.constant 2.000000e+00 : f32
      %44 = arith.divf %41, %cst_24 : f32
      %45 = arith.select %43, %44, %41 : f32
      %c0_25 = arith.constant 0 : index
      %c0_26 = arith.constant 0 : index
      %46 = memref.load %arg7[%c0_25, %c0_26] : memref<1x1xf32, #tpu.memory_space<smem>>
      memref.store %45, %arg7[%c0_25, %c0_26] : memref<1x1xf32, #tpu.memory_space<smem>>
    } else {
    }
    return
  }
  func.func @transform_0(%arg0: i32) -> (i32, i32) {
    %c0_i32 = arith.constant 0 : i32
    %c0_i32_0 = arith.constant 0 : i32
    return %arg0, %c0_i32 : i32, i32
  }
  func.func @transform_1(%arg0: i32) -> (i32, i32) {
    %c0_i32 = arith.constant 0 : i32
    %c0_i32_0 = arith.constant 0 : i32
    return %arg0, %c0_i32 : i32, i32
  }
  func.func @transform_2(%arg0: i32) -> (i32, i32) {
    %c0_i32 = arith.constant 0 : i32
    %c0_i32_0 = arith.constant 0 : i32
    return %arg0, %c0_i32 : i32, i32
  }
  func.func @transform_3(%arg0: i32) -> (i32, i32) {
    %c0_i32 = arith.constant 0 : i32
    %c0_i32_0 = arith.constant 0 : i32
    return %arg0, %c0_i32 : i32, i32
  }
  func.func @transform_4(%arg0: i32) -> (i32, i32) {
    %c0_i32 = arith.constant 0 : i32
    %c0_i32_0 = arith.constant 0 : i32
    return %arg0, %c0_i32 : i32, i32
  }
  func.func @transform_5(%arg0: i32) -> (i32, i32) {
    %c0_i32 = arith.constant 0 : i32
    %c0_i32_0 = arith.constant 0 : i32
    return %arg0, %c0_i32 : i32, i32
  }
  func.func @transform_6(%arg0: i32) -> (i32, i32) {
    %c0_i32 = arith.constant 0 : i32
    %c0_i32_0 = arith.constant 0 : i32
    %c0_i32_1 = arith.constant 0 : i32
    return %c0_i32, %c0_i32_0 : i32, i32
  }
}

</mosaic_0001>

<llo_original>
// kernel: tpu_custom_call.1
$region0: #{tpu_custom_call.1}
  #allocation0 [shape = 'u32[]', space=smem, size = 0x4, offset = 0x4, fixed_abs, tag = 'smem constant byte address 0x4 - core index']
  #allocation1 [shape = 'u32[144,128]{1,0:T(1,128)}', space=vmem, size = 0x12000, scoped, tag = 'internal scratch']
  #allocation2 [shape = 'f32[2]{0:T(128)}', space=smem, size = 0x200, scoped, tag = 'scratch operand']
  %s0 = inlined_call_operand.hbm [shape: f32[2,16], index: 0, kind: input, shape index: {}]
  %s1 = inlined_call_operand.hbm [shape: f32[2,16], index: 1, kind: input, shape index: {}]
  %s2 = inlined_call_operand.vmem [shape: f32[2,16], index: 2, kind: input, shape index: {}]
  %s3 = inlined_call_operand.vmem [shape: f32[2,16], index: 3, kind: input, shape index: {}]
  %s4 = inlined_call_operand.vmem [shape: f32[2,16], index: 4, kind: input, shape index: {}]
  %s5 = inlined_call_operand.vmem [shape: f32[2,16], index: 5, kind: input, shape index: {}]
  %s6 = inlined_call_operand.hbm [shape: f32[1,1], index: 6, kind: output, shape index: {}]
  %s7 = sld [smem:[#allocation0]]
  $region50: #{tpu_custom_call.1} parent=0
    _
  %s9 = ssub.s32 1, %s7
  %s10 = scalar_select 0, %s9, %s7
  $region1: #{tpu_custom_call.1} parent=0
    #allocation3 [shape = 'u8[1024]{0}', space=vmem, size = 0x400, scoped, tag = 'input window, operand 0, single buffered']
    #allocation4 [shape = 's32[1]{0}', space=sflag, size = 0x4, scoped, tag = 'scoped memory for tpu_custom_call.1']
    #allocation5 [shape = 's32[1]{0}', space=sflag, size = 0x4, scoped, tag = 'scoped memory for tpu_custom_call.1']
    #allocation6 [shape = 'u8[1024]{0}', space=vmem, size = 0x400, scoped, tag = 'input window, operand 1, single buffered']
    #allocation7 [shape = 's32[1]{0}', space=sflag, size = 0x4, scoped, tag = 'scoped memory for tpu_custom_call.1']
    #allocation8 [shape = 'u8[512]{0}', space=smem, size = 0x200, scoped, tag = 'output window, operand 0, single buffered']
    %11 = vsyncpa [#allocation4], 0
    %12 = vsyncpa [#allocation7], 0
    %13 = vsyncpa [#allocation5], 0
    // Predicated region
    $region2: #{tpu_custom_call.1} parent=1 // pred_check
      _
    $region3: #{tpu_custom_call.1} parent=1 // pred_check_branch
      %15 = sbr.rel (0) target = $region5
    $region4: #{tpu_custom_call.1} parent=1 // pred_region
      %s17 = ssub.s32 32, 32
      %18 = vsyncadd [#allocation4], %s17
      %s20 = sshll.u32 [#allocation3], 4
      %s21 = int_to_ptr.vmem [resolvable:$true] %s20
      %23 = dma.hbm_to_vmem [thread:$0]  %s0, 32, %s21, [#allocation4]
    $region5: #{tpu_custom_call.1} parent=1 // pred_fallthru
      _
    // Predicated region
    $region6: #{tpu_custom_call.1} parent=1 // pred_check
      _
    $region7: #{tpu_custom_call.1} parent=1 // pred_check_branch
      %25 = sbr.rel (0) target = $region9
    $region8: #{tpu_custom_call.1} parent=1 // pred_region
      %s27 = ssub.s32 32, 32
      %28 = vsyncadd [#allocation7], %s27
      %s30 = sshll.u32 [#allocation6], 4
      %s31 = int_to_ptr.vmem [resolvable:$true] %s30
      %33 = dma.hbm_to_vmem [thread:$0]  %s1, 32, %s31, [#allocation7]
    $region9: #{tpu_custom_call.1} parent=1 // pred_fallthru
      _
    // Predicated region
    $region10: #{tpu_custom_call.1} parent=1 // pred_check
      _
    $region11: #{tpu_custom_call.1} parent=1 // pred_check_branch
      %35 = sbr.rel (0) target = $region13
    $region12: #{tpu_custom_call.1} parent=1 // pred_region
      _
    $region13: #{tpu_custom_call.1} parent=1 // pred_fallthru
      _
    // Predicated region
    $region14: #{tpu_custom_call.1} parent=1 // pred_check
      _
    $region15: #{tpu_custom_call.1} parent=1 // pred_check_branch
      %37 = sbr.rel (0) target = $region17
    $region16: #{tpu_custom_call.1} parent=1 // pred_region
      _
    $region17: #{tpu_custom_call.1} parent=1 // pred_fallthru
      _
    // Predicated region
    $region18: #{tpu_custom_call.1} parent=1 // pred_check
      _
    $region19: #{tpu_custom_call.1} parent=1 // pred_check_branch
      %39 = sbr.rel (0) target = $region21
    $region20: #{tpu_custom_call.1} parent=1 // pred_region
      _
    $region21: #{tpu_custom_call.1} parent=1 // pred_fallthru
      _
    // Predicated region
    $region22: #{tpu_custom_call.1} parent=1 // pred_check
      _
    $region23: #{tpu_custom_call.1} parent=1 // pred_check_branch
      %41 = sbr.rel (0) target = $region25
    $region24: #{tpu_custom_call.1} parent=1 // pred_region
      _
    $region25: #{tpu_custom_call.1} parent=1 // pred_fallthru
      _
    // Predicated region
    $region26: #{tpu_custom_call.1} parent=1 // pred_check
      _
    $region27: #{tpu_custom_call.1} parent=1 // pred_check_branch
      %43 = sbr.rel (0) target = $region29
    $region28: #{tpu_custom_call.1} parent=1 // pred_region
      %44 = dma.done [#allocation4], 32
    $region29: #{tpu_custom_call.1} parent=1 // pred_fallthru
      _
    // Predicated region
    $region30: #{tpu_custom_call.1} parent=1 // pred_check
      _
    $region31: #{tpu_custom_call.1} parent=1 // pred_check_branch
      %46 = sbr.rel (0) target = $region33
    $region32: #{tpu_custom_call.1} parent=1 // pred_region
      %47 = dma.done [#allocation7], 32
    $region33: #{tpu_custom_call.1} parent=1 // pred_fallthru
      _
    %p48 = scmp.eq.s32.totalorder 0, 0
    // Predicated region
    $region34: #{tpu_custom_call.1} parent=1 // pred_check
      %p49 = pneg %p48
    $region35: #{tpu_custom_call.1} parent=1 // pred_check_branch
      %51 = sbr.rel (%p49) target = $region37
    $region36: #{tpu_custom_call.1} parent=1 // pred_region
      %s52 = scalar_lea.smem [#allocation2], 0
      %53 = sst [smem:[%s52]] 0.0
      %s54 = scalar_lea.smem [#allocation2], 1
      %55 = sst [smem:[%s54]] 0.0
    $region37: #{tpu_custom_call.1} parent=1 // pred_fallthru
      _
    %v56 = vld [vmem:[#allocation3] sm:$0x3]
    %v57 = vld [vmem:[#allocation6] sm:$0x3]
    %v58 = vld [vmem:[%s2] sm:$0x3]
    %v59 = vld [vmem:[%s3] sm:$0x3]
    %v60 = vld [vmem:[%s4] sm:$0x3]
    %v61 = vld [vmem:[%s5] sm:$0x3]
    %v62 = vmul.f32 %v58, 1.4142135
    %v63 = vadd.f32 %v62, 1e-09
    %v64 = vrcp.pop %v63
    %v65 = vlog2.pop %v58
    %v66 = vmul.f32 %v65, 0.6931472
    %v67 = vadd.f32 %v66, 0.9189385
    %v68 = vsub.f32 %v59, %v57
    %v69 = vand.u32 2147483647, %v68
    %v70 = vmul.f32 %v69, %v64
    %v71 = vadd.f32 %v67, %v70
    %v72 = vmul.f32 %v56, %v61
    %v73 = vmul.f32 %v71, %v60
    %v74 = vadd.f32 %v72, %v73
    %s75 = sld [smem:[#allocation2]]
    %vm76 = vcmask 123904
    %v77 = vsel %vm76, %v74, 0.0
    %78 = vadd.xlane.f32.xlu0 %v77
    %v79 = vpop.xlane.xlu0 %78
    %v80 = vrot.slane %v79, 4
    %v81 = vadd.f32 %v79, %v80
    %v82 = vrot.slane %v81, 2
    %v83 = vadd.f32 %v81, %v82
    %v84 = vrot.slane %v83, 1
    %v85 = vadd.f32 %v83, %v84
    %s86 = vtos %v85
    %s87 = sadd.f32 %s75, %s86
    %s88 = scalar_lea.smem [#allocation2], 0
    %89 = sst [smem:[%s88]] %s87
    %s90 = sld [smem:[#allocation2 + $0x1]]
    %v91 = vsel %vm76, %v60, 0.0
    %92 = vadd.xlane.f32.xlu0 %v91
    %v93 = vpop.xlane.xlu0 %92
    %v94 = vrot.slane %v93, 4
    %v95 = vadd.f32 %v93, %v94
    %v96 = vrot.slane %v95, 2
    %v97 = vadd.f32 %v95, %v96
    %v98 = vrot.slane %v97, 1
    %v99 = vadd.f32 %v97, %v98
    %s100 = vtos %v99
    %s101 = sadd.f32 %s90, %s100
    %s102 = scalar_lea.smem [#allocation2], 1
    %103 = sst [smem:[%s102]] %s101
    // Predicated region
    $region38: #{tpu_custom_call.1} parent=1 // pred_check
      %p104 = pneg %p48
    $region39: #{tpu_custom_call.1} parent=1 // pred_check_branch
      %106 = sbr.rel (%p104) target = $region41
    $region40: #{tpu_custom_call.1} parent=1 // pred_region
      %s107 = sld [smem:[#allocation2]]
      %s108 = sld [smem:[#allocation2 + $0x1]]
      %p109 = scmp.gt.f32.partialorder %s108, 0.0
      %v110 = vrcp.pop 2.0
      %s111 = vtos %v110
      %s112 = smul.f32 %s107, %s111
      %s113 = scalar_select %p109, %s112, %s107
      %s114 = scalar_lea.smem [#allocation8], 0
      %115 = sst [smem:[%s114]] %s113
    $region41: #{tpu_custom_call.1} parent=1 // pred_fallthru
      _
    // Predicated region
    $region42: #{tpu_custom_call.1} parent=1 // pred_check
      _
    $region43: #{tpu_custom_call.1} parent=1 // pred_check_branch
      %117 = sbr.rel (0) target = $region45
    $region44: #{tpu_custom_call.1} parent=1 // pred_region
      %s119 = ssub.s32 16, 16
      %120 = vsyncadd [#allocation5], %s119
      %123 = dma.smem_to_hbm [#allocation8], 16, %s6, [#allocation5]
    $region45: #{tpu_custom_call.1} parent=1 // pred_fallthru
      _
    // Predicated region
    $region46: #{tpu_custom_call.1} parent=1 // pred_check
      _
    $region47: #{tpu_custom_call.1} parent=1 // pred_check_branch
      %125 = sbr.rel (0) target = $region49
    $region48: #{tpu_custom_call.1} parent=1 // pred_region
      %126 = dma.done [#allocation5], 16
    $region49: #{tpu_custom_call.1} parent=1 // pred_fallthru
      _
    %127 = sfence
    %128 = vsyncpa [#allocation4], 1
    %129 = vsyncpa [#allocation7], 1
    %130 = vsyncpa [#allocation5], 1

</llo_original>
